<compile_context>
chip_gen: v7x
topology: tpu7x:2x2x1
jax: 0.10.0
libtpu: 0.0.40
codegen_flags: <defaults>
</compile_context>

<pallas_src>
import jax
import jax.numpy as jnp
from jax.experimental import pallas as pl
from jax.experimental.pallas import tpu as pltpu

_LANE = 128
_SUBLANE = 8


def _round_up(v: int, m: int) -> int:
    return (v + m - 1) // m * m


def _choose_tile_b(batch: int, n: int, d: int) -> int:
    """Batch tile that keeps double-buffered x tiles + temps under ~16 MiB,
    i.e. half the 32 MiB scoped VMEM limit requested below (safe on v5e/v6e
    and on v7x's 64 MiB physical VMEM)."""
    budget = 16 * 1024 * 1024
    per_row = max(n * d * 4, 1)               # one f32 row of x
    tb = budget // (4 * per_row)              # 2x double-buffer + ~2x temps
    tb = max(_SUBLANE, min(512, (tb // _SUBLANE) * _SUBLANE))
    return min(tb, _round_up(batch, _SUBLANE))


def _local_pool(x, agent):
    """x: (TB, N, D) f32, agent: (TB, 1) int32 -> x[b, agent[b], :] (one-hot)."""
    tb, n, _ = x.shape
    node_ids = jax.lax.broadcasted_iota(jnp.int32, (tb, n), 1)
    mask = (node_ids == agent).astype(x.dtype)             # (TB, N)
    return jnp.sum(x * mask[:, :, None], axis=1)           # (TB, D)


def _reducer(parts, b1, w2, b2):
    """parts: list of (h (TB, Din) f32, w (Din, HID) bf16). 2-layer ReLU MLP,
    bf16 MXU inputs with f32 accumulation."""
    acc = b1
    for h, w in parts:
        acc = acc + jnp.dot(h.astype(jnp.bfloat16), w,
                            preferred_element_type=jnp.float32)
    h1 = jnp.maximum(acc, 0.0)
    out = jnp.dot(h1.astype(jnp.bfloat16), w2,
                  preferred_element_type=jnp.float32) + b2
    return jnp.maximum(out, 0.0)


def _mean_kernel(x_ref, w1_ref, b1_ref, w2_ref, b2_ref, out_ref):
    x = x_ref[...]
    mean = jnp.sum(x, axis=1) * jnp.float32(1.0 / x.shape[1])
    out_ref[...] = _reducer([(mean, w1_ref[...])], b1_ref[...],
                            w2_ref[...], b2_ref[...]).astype(out_ref.dtype)


def _local_kernel(x_ref, agent_ref, w1_ref, b1_ref, w2_ref, b2_ref, out_ref):
    local = _local_pool(x_ref[...], agent_ref[...])
    out_ref[...] = _reducer([(local, w1_ref[...])], b1_ref[...],
                            w2_ref[...], b2_ref[...]).astype(out_ref.dtype)


def _hybrid_kernel(x_ref, agent_ref, w1a_ref, w1b_ref, b1_ref, w2_ref, b2_ref,
                   out_ref):
    x = x_ref[...]
    mean = jnp.sum(x, axis=1) * jnp.float32(1.0 / x.shape[1])
    local = _local_pool(x, agent_ref[...])
    # concat([local, mean], -1) @ w1  ==  local @ w1[:D] + mean @ w1[D:]
    out_ref[...] = _reducer([(local, w1a_ref[...]), (mean, w1b_ref[...])],
                            b1_ref[...], w2_ref[...],
                            b2_ref[...]).astype(out_ref.dtype)


def general_gnn_pooling(x, agent_nodes, params, aggregator_name="hybrid"):
    """Pallas-backed forward of GeneralGNNPooling.

    x:           (B, N, D) float32
    agent_nodes: (B,) int32
    params:      (w1, b1, w2, b2) with w* pre-transposed to (in, out)
    """
    if aggregator_name == "attention":
        # TODO(synk): "attention" aggregation raises NotImplementedError in the
        # reference PyTorch module as well; not implemented here.
        raise NotImplementedError("attention aggregation not yet implemented")
    if aggregator_name not in ("global", "mean", "local", "agent_node", "hybrid"):
        raise NotImplementedError(aggregator_name)

    B, N, D = x.shape
    w1, b1, w2, b2 = params                    # f32, (in, out) layout
    hid = w1.shape[1]
    out_dim = w2.shape[1]

    # ---- lane-dense padding of the reducer (zero cols/rows are inert) ----
    HID = _round_up(hid, _LANE)
    OUTP = _round_up(out_dim, _LANE)
    w1p = jnp.zeros((w1.shape[0], HID), jnp.bfloat16).at[:, :hid].set(
        w1.astype(jnp.bfloat16))
    b1p = jnp.zeros((1, HID), jnp.float32).at[:, :hid].set(
        b1.reshape(1, -1).astype(jnp.float32))
    w2p = jnp.zeros((HID, OUTP), jnp.bfloat16).at[:hid, :out_dim].set(
        w2.astype(jnp.bfloat16))
    b2p = jnp.zeros((1, OUTP), jnp.float32).at[:, :out_dim].set(
        b2.reshape(1, -1).astype(jnp.float32))

    # ---- batch tiling (pad B so the grid divides evenly) ----
    TB = _choose_tile_b(B, N, D)
    Bp = _round_up(B, TB)
    xp = x.astype(jnp.float32)
    agp = agent_nodes.astype(jnp.int32)
    if Bp != B:
        xp = jnp.zeros((Bp, N, D), jnp.float32).at[:B].set(xp)
        agp = jnp.zeros((Bp,), jnp.int32).at[:B].set(agp)
    ag2 = agp.reshape(Bp, 1)
    grid = (Bp // TB,)

    x_spec = pl.BlockSpec((TB, N, D), lambda i: (i, 0, 0))
    ag_spec = pl.BlockSpec((TB, 1), lambda i: (i, 0))
    out_spec = pl.BlockSpec((TB, OUTP), lambda i: (i, 0))

    def resident(a):  # full-array block, constant index_map -> stays in VMEM
        return pl.BlockSpec(a.shape, lambda i: (0,) * a.ndim)

    if aggregator_name in ("global", "mean"):
        kernel = _mean_kernel
        inputs = (xp, w1p, b1p, w2p, b2p)
        in_specs = [x_spec, resident(w1p), resident(b1p), resident(w2p),
                    resident(b2p)]
    elif aggregator_name in ("local", "agent_node"):
        # NOTE: a scalar-prefetch + pl.Element row-gather index_map on x could
        # cut HBM traffic by N x in local-only mode; kept as the masked reduce
        # for robustness (hybrid, the default, needs the full tile anyway).
        kernel = _local_kernel
        inputs = (xp, ag2, w1p, b1p, w2p, b2p)
        in_specs = [x_spec, ag_spec, resident(w1p), resident(b1p),
                    resident(w2p), resident(b2p)]
    else:  # hybrid
        assert w1.shape[0] == 2 * D, "hybrid reducer expects in_dim == 2*D"
        w1a, w1b = w1p[:D, :], w1p[D:, :]     # [local rows | mean rows]
        kernel = _hybrid_kernel
        inputs = (xp, ag2, w1a, w1b, b1p, w2p, b2p)
        in_specs = [x_spec, ag_spec, resident(w1a), resident(w1b),
                    resident(b1p), resident(w2p), resident(b2p)]

    out = pl.pallas_call(
        kernel,
        out_shape=jax.ShapeDtypeStruct((Bp, OUTP), jnp.float32),
        grid=grid,
        in_specs=in_specs,
        out_specs=out_spec,
        compiler_params=pltpu.CompilerParams(
            dimension_semantics=("parallel",),
            vmem_limit_bytes=32 * 1024 * 1024),
    )(*inputs)
    return out[:B, :out_dim]


def init_params(key, input_dim, output_dim, aggregator_name="hybrid"):
    """Synthetic init mirroring the module; weights stored (in, out)."""
    d = input_dim * 2 if aggregator_name == "hybrid" else input_dim
    k1, k2, k3, k4 = jax.random.split(key, 4)
    w1 = jax.random.normal(k1, (d, d), jnp.float32) / jnp.sqrt(jnp.float32(d))
    b1 = jax.random.normal(k3, (1, d), jnp.float32) * 0.1
    w2 = jax.random.normal(k2, (d, output_dim), jnp.float32) / jnp.sqrt(
        jnp.float32(d))
    b2 = jax.random.normal(k4, (1, output_dim), jnp.float32) * 0.1
    return w1, b1, w2, b2


def _ref_forward(x, agent_nodes, params, aggregator_name="hybrid"):
    """Pure-JAX reference of the PyTorch forward (same bf16 matmul precision)."""
    w1, b1, w2, b2 = params
    local = x[jnp.arange(x.shape[0]), agent_nodes, :]
    mean = jnp.mean(x, axis=1)
    if aggregator_name in ("global", "mean"):
        h = mean
    elif aggregator_name in ("local", "agent_node"):
        h = local
    else:
        h = jnp.concatenate([local, mean], axis=-1)
    h = jnp.maximum(
        jnp.dot(h.astype(jnp.bfloat16), w1.astype(jnp.bfloat16),
                preferred_element_type=jnp.float32) + b1.reshape(1, -1), 0.0)
    return jnp.maximum(
        jnp.dot(h.astype(jnp.bfloat16), w2.astype(jnp.bfloat16),
                preferred_element_type=jnp.float32) + b2.reshape(1, -1), 0.0)


if __name__ == "__main__":
    B, N, D, OUT = 2, 8, 32, 16
    key = jax.random.PRNGKey(0)
    kx, ka, kp = jax.random.split(key, 3)

    x = jax.random.normal(kx, (B, N, D), jnp.float32)
    agent_nodes = jax.random.randint(ka, (B,), 0, N, jnp.int32)

    ok = True
    for name in ("hybrid", "mean", "local"):
        params = init_params(kp, D, OUT, aggregator_name=name)
        out = general_gnn_pooling(x, agent_nodes, params, aggregator_name=name)
        out = jax.block_until_ready(out)
        ref = _ref_forward(x, agent_nodes, params, aggregator_name=name)
        ok = ok and bool(jnp.allclose(out, ref, atol=2e-3, rtol=2e-3))

    print("KERNEL_OK" if ok else "MISMATCH")
</pallas_src>

<mosaic_0001>
module attributes {stable_mosaic.version = 11 : i64} {
  func.func @_hybrid_kernel(%arg0: i32, %arg1: memref<8x8x32xf32, #tpu.memory_space<vmem>>, %arg2: memref<8x1xi32, #tpu.memory_space<vmem>>, %arg3: memref<32x128xbf16, #tpu.memory_space<vmem>>, %arg4: memref<32x128xbf16, #tpu.memory_space<vmem>>, %arg5: memref<1x128xf32, #tpu.memory_space<vmem>>, %arg6: memref<128x128xbf16, #tpu.memory_space<vmem>>, %arg7: memref<1x128xf32, #tpu.memory_space<vmem>>, %arg8: memref<8x128xf32, #tpu.memory_space<vmem>>) attributes {dimension_semantics = [#tpu.dimension_semantics<parallel>], iteration_bounds = array<i64: 1>, scalar_prefetch = 0 : i64, scratch_operands = 0 : i64, tpu.core_type = #tpu.core_type<tc>, window_params = [{transform_indices = @transform_0, window_bounds = array<i64: 8, 8, 32>}, {transform_indices = @transform_1, window_bounds = array<i64: 8, 1>}, {pipeline_mode = #tpu.pipeline_mode<synchronous>, transform_indices = @transform_2, window_bounds = array<i64: 32, 128>}, {pipeline_mode = #tpu.pipeline_mode<synchronous>, transform_indices = @transform_3, window_bounds = array<i64: 32, 128>}, {pipeline_mode = #tpu.pipeline_mode<synchronous>, transform_indices = @transform_4, window_bounds = array<i64: 1, 128>}, {pipeline_mode = #tpu.pipeline_mode<synchronous>, transform_indices = @transform_5, window_bounds = array<i64: 128, 128>}, {pipeline_mode = #tpu.pipeline_mode<synchronous>, transform_indices = @transform_6, window_bounds = array<i64: 1, 128>}, {transform_indices = @transform_7, window_bounds = array<i64: 8, 128>}]} {
    %c0 = arith.constant 0 : index
    %c0_0 = arith.constant 0 : index
    %c0_1 = arith.constant 0 : index
    %0 = vector.load %arg1[%c0, %c0_0, %c0_1] : memref<8x8x32xf32, #tpu.memory_space<vmem>>, vector<8x8x32xf32>
    %cst = arith.constant dense<0.000000e+00> : vector<8x32xf32>
    %1 = vector.multi_reduction <add>, %0, %cst [1] : vector<8x8x32xf32> to vector<8x32xf32>
    %cst_2 = arith.constant 1.250000e-01 : f32
    %2 = vector.broadcast %cst_2 : f32 to vector<8x32xf32>
    %3 = arith.mulf %1, %2 : vector<8x32xf32>
    %c0_3 = arith.constant 0 : index
    %c0_4 = arith.constant 0 : index
    %4 = vector.load %arg2[%c0_3, %c0_4] : memref<8x1xi32, #tpu.memory_space<vmem>>, vector<8x1xi32>
    %5 = tpu.iota {dimensions = array<i32: 1>} : vector<8x8xi32>
    %6 = vector.broadcast %4 : vector<8x1xi32> to vector<8x8xi32>
    %7 = arith.cmpi eq, %5, %6 : vector<8x8xi32>
    %8 = arith.extui %7 : vector<8x8xi1> to vector<8x8xi32>
    %9 = arith.sitofp %8 : vector<8x8xi32> to vector<8x8xf32>
    %10 = vector.shape_cast %9 : vector<8x8xf32> to vector<8x8x1xf32>
    %11 = vector.broadcast %10 : vector<8x8x1xf32> to vector<8x8x32xf32>
    %12 = arith.mulf %0, %11 : vector<8x8x32xf32>
    %cst_5 = arith.constant dense<0.000000e+00> : vector<8x32xf32>
    %13 = vector.multi_reduction <add>, %12, %cst_5 [1] : vector<8x8x32xf32> to vector<8x32xf32>
    %c0_6 = arith.constant 0 : index
    %c0_7 = arith.constant 0 : index
    %14 = vector.load %arg3[%c0_6, %c0_7] : memref<32x128xbf16, #tpu.memory_space<vmem>>, vector<32x128xbf16>
    %c0_8 = arith.constant 0 : index
    %c0_9 = arith.constant 0 : index
    %15 = vector.load %arg4[%c0_8, %c0_9] : memref<32x128xbf16, #tpu.memory_space<vmem>>, vector<32x128xbf16>
    %c0_10 = arith.constant 0 : index
    %c0_11 = arith.constant 0 : index
    %16 = vector.load %arg5[%c0_10, %c0_11] : memref<1x128xf32, #tpu.memory_space<vmem>>, vector<1x128xf32>
    %c0_12 = arith.constant 0 : index
    %c0_13 = arith.constant 0 : index
    %17 = vector.load %arg6[%c0_12, %c0_13] : memref<128x128xbf16, #tpu.memory_space<vmem>>, vector<128x128xbf16>
    %c0_14 = arith.constant 0 : index
    %c0_15 = arith.constant 0 : index
    %18 = vector.load %arg7[%c0_14, %c0_15] : memref<1x128xf32, #tpu.memory_space<vmem>>, vector<1x128xf32>
    %19 = arith.truncf %13 : vector<8x32xf32> to vector<8x32xbf16>
    %cst_16 = arith.constant dense<0.000000e+00> : vector<8x128xf32>
    %20 = tpu.matmul %19, %14, %cst_16 {dimension_numbers = #tpu.dot_dimension_numbers<[1], [0], [0], [1], [0, 0, 1, 1], [], []>} : vector<8x32xbf16>, vector<32x128xbf16>, vector<8x128xf32> -> vector<8x128xf32>
    %21 = vector.broadcast %16 : vector<1x128xf32> to vector<8x128xf32>
    %22 = arith.addf %21, %20 : vector<8x128xf32>
    %23 = arith.truncf %3 : vector<8x32xf32> to vector<8x32xbf16>
    %cst_17 = arith.constant dense<0.000000e+00> : vector<8x128xf32>
    %24 = tpu.matmul %23, %15, %cst_17 {dimension_numbers = #tpu.dot_dimension_numbers<[1], [0], [0], [1], [0, 0, 1, 1], [], []>} : vector<8x32xbf16>, vector<32x128xbf16>, vector<8x128xf32> -> vector<8x128xf32>
    %25 = arith.addf %22, %24 : vector<8x128xf32>
    %cst_18 = arith.constant 0.000000e+00 : f32
    %26 = vector.broadcast %cst_18 : f32 to vector<8x128xf32>
    %27 = arith.maximumf %25, %26 : vector<8x128xf32>
    %28 = arith.truncf %27 : vector<8x128xf32> to vector<8x128xbf16>
    %cst_19 = arith.constant dense<0.000000e+00> : vector<8x128xf32>
    %29 = tpu.matmul %28, %17, %cst_19 {dimension_numbers = #tpu.dot_dimension_numbers<[1], [0], [0], [1], [0, 0, 1, 1], [], []>} : vector<8x128xbf16>, vector<128x128xbf16>, vector<8x128xf32> -> vector<8x128xf32>
    %30 = vector.broadcast %18 : vector<1x128xf32> to vector<8x128xf32>
    %31 = arith.addf %29, %30 : vector<8x128xf32>
    %cst_20 = arith.constant 0.000000e+00 : f32
    %32 = vector.broadcast %cst_20 : f32 to vector<8x128xf32>
    %33 = arith.maximumf %31, %32 : vector<8x128xf32>
    %c0_21 = arith.constant 0 : index
    %c0_22 = arith.constant 0 : index
    %34 = vector.load %arg8[%c0_21, %c0_22] : memref<8x128xf32, #tpu.memory_space<vmem>>, vector<8x128xf32>
    tpu.vector_store %arg8[%c0_21, %c0_22], %33 {strides = array<i32>} : memref<8x128xf32, #tpu.memory_space<vmem>>, vector<8x128xf32>,
    return
  }
  func.func @transform_0(%arg0: i32) -> (i32, i32, i32) {
    %c0_i32 = arith.constant 0 : i32
    %c0_i32_0 = arith.constant 0 : i32
    %c0_i32_1 = arith.constant 0 : i32
    return %arg0, %c0_i32, %c0_i32_0 : i32, i32, i32
  }
  func.func @transform_1(%arg0: i32) -> (i32, i32) {
    %c0_i32 = arith.constant 0 : i32
    %c0_i32_0 = arith.constant 0 : i32
    return %arg0, %c0_i32 : i32, i32
  }
  func.func @transform_2(%arg0: i32) -> (i32, i32) {
    %c0_i32 = arith.constant 0 : i32
    %c0_i32_0 = arith.constant 0 : i32
    %c0_i32_1 = arith.constant 0 : i32
    return %c0_i32, %c0_i32_0 : i32, i32
  }
  func.func @transform_3(%arg0: i32) -> (i32, i32) {
    %c0_i32 = arith.constant 0 : i32
    %c0_i32_0 = arith.constant 0 : i32
    %c0_i32_1 = arith.constant 0 : i32
    return %c0_i32, %c0_i32_0 : i32, i32
  }
  func.func @transform_4(%arg0: i32) -> (i32, i32) {
    %c0_i32 = arith.constant 0 : i32
    %c0_i32_0 = arith.constant 0 : i32
    %c0_i32_1 = arith.constant 0 : i32
    return %c0_i32, %c0_i32_0 : i32, i32
  }
  func.func @transform_5(%arg0: i32) -> (i32, i32) {
    %c0_i32 = arith.constant 0 : i32
    %c0_i32_0 = arith.constant 0 : i32
    %c0_i32_1 = arith.constant 0 : i32
    return %c0_i32, %c0_i32_0 : i32, i32
  }
  func.func @transform_6(%arg0: i32) -> (i32, i32) {
    %c0_i32 = arith.constant 0 : i32
    %c0_i32_0 = arith.constant 0 : i32
    %c0_i32_1 = arith.constant 0 : i32
    return %c0_i32, %c0_i32_0 : i32, i32
  }
  func.func @transform_7(%arg0: i32) -> (i32, i32) {
    %c0_i32 = arith.constant 0 : i32
    %c0_i32_0 = arith.constant 0 : i32
    return %arg0, %c0_i32 : i32, i32
  }
}

</mosaic_0001>

<llo_original>
// kernel: tpu_custom_call.1
$region0: #{tpu_custom_call.1}
  #allocation0 [shape = 'u32[]', space=smem, size = 0x4, offset = 0x4, fixed_abs, tag = 'smem constant byte address 0x4 - core index']
  #allocation1 [shape = 'u32[144,128]{1,0:T(1,128)}', space=vmem, size = 0x12000, scoped, tag = 'internal scratch']
  %s0 = inlined_call_operand.hbm [shape: f32[8,8,32], index: 0, kind: input, shape index: {}]
  %s1 = inlined_call_operand.vmem [shape: s32[8,1], index: 1, kind: input, shape index: {}]
  %s2 = inlined_call_operand.vmem [shape: bf16[32,128], index: 2, kind: input, shape index: {}]
  %s3 = inlined_call_operand.hbm [shape: bf16[32,128], index: 3, kind: input, shape index: {}]
  %s4 = inlined_call_operand.vmem [shape: f32[1,128], index: 4, kind: input, shape index: {}]
  %s5 = inlined_call_operand.hbm [shape: bf16[128,128], index: 5, kind: input, shape index: {}]
  %s6 = inlined_call_operand.vmem [shape: f32[1,128], index: 6, kind: input, shape index: {}]
  %s7 = inlined_call_operand.hbm [shape: f32[8,128], index: 7, kind: output, shape index: {}]
  %s8 = sld [smem:[#allocation0]]
  $region50: #{tpu_custom_call.1} parent=0
    _
  %s10 = ssub.s32 1, %s8
  %s11 = scalar_select 0, %s10, %s8
  $region1: #{tpu_custom_call.1} parent=0
    #allocation2 [shape = 'u8[32768]{0}', space=vmem, size = 0x8000, scoped, tag = 'input window, operand 0, single buffered']
    #allocation3 [shape = 's32[1]{0}', space=sflag, size = 0x4, scoped, tag = 'scoped memory for tpu_custom_call.1']
    #allocation4 [shape = 's32[1]{0}', space=sflag, size = 0x4, scoped, tag = 'scoped memory for tpu_custom_call.1']
    #allocation5 [shape = 'u8[8192]{0}', space=vmem, size = 0x2000, scoped, tag = 'input window, operand 3, single buffered']
    #allocation6 [shape = 's32[1]{0}', space=sflag, size = 0x4, scoped, tag = 'scoped memory for tpu_custom_call.1']
    #allocation7 [shape = 'u8[32768]{0}', space=vmem, size = 0x8000, scoped, tag = 'input window, operand 5, single buffered']
    #allocation8 [shape = 'u8[4096]{0}', space=vmem, size = 0x1000, scoped, tag = 'output window, operand 0, single buffered']
    %12 = vsyncpa [#allocation3], 0
    %13 = vsyncpa [#allocation6], 0
    %14 = vsyncpa [#allocation4], 0
    // Predicated region
    $region2: #{tpu_custom_call.1} parent=1 // pred_check
      _
    $region3: #{tpu_custom_call.1} parent=1 // pred_check_branch
      %16 = sbr.rel (0) target = $region5
    $region4: #{tpu_custom_call.1} parent=1 // pred_region
      %s18 = ssub.s32 1024, 1024
      %19 = vsyncadd [#allocation3], %s18
      %s20 = sshll.u32 [#allocation2], 4
      %s21 = int_to_ptr.vmem [resolvable:$true] %s20
      %26 = dma.hbm_to_vmem [thread:$0]  %s0, 1024, %s21, [#allocation3], 128, 128, 8
    $region5: #{tpu_custom_call.1} parent=1 // pred_fallthru
      _
    // Predicated region
    $region6: #{tpu_custom_call.1} parent=1 // pred_check
      _
    $region7: #{tpu_custom_call.1} parent=1 // pred_check_branch
      %28 = sbr.rel (0) target = $region9
    $region8: #{tpu_custom_call.1} parent=1 // pred_region
      _
    $region9: #{tpu_custom_call.1} parent=1 // pred_fallthru
      _
    // Predicated region
    $region10: #{tpu_custom_call.1} parent=1 // pred_check
      _
    $region11: #{tpu_custom_call.1} parent=1 // pred_check_branch
      %30 = sbr.rel (0) target = $region13
    $region12: #{tpu_custom_call.1} parent=1 // pred_region
      _
    $region13: #{tpu_custom_call.1} parent=1 // pred_fallthru
      _
    // Predicated region
    $region14: #{tpu_custom_call.1} parent=1 // pred_check
      _
    $region15: #{tpu_custom_call.1} parent=1 // pred_check_branch
      %32 = sbr.rel (0) target = $region17
    $region16: #{tpu_custom_call.1} parent=1 // pred_region
      %s34 = ssub.s32 256, 256
      %35 = vsyncadd [#allocation6], %s34
      %s36 = sshll.u32 [#allocation5], 4
      %s37 = int_to_ptr.vmem [resolvable:$true] %s36
      %42 = dma.hbm_to_vmem [thread:$0]  %s3, 256, %s37, [#allocation6], 64, 64, 4
    $region17: #{tpu_custom_call.1} parent=1 // pred_fallthru
      _
    // Predicated region
    $region18: #{tpu_custom_call.1} parent=1 // pred_check
      _
    $region19: #{tpu_custom_call.1} parent=1 // pred_check_branch
      %44 = sbr.rel (0) target = $region21
    $region20: #{tpu_custom_call.1} parent=1 // pred_region
      _
    $region21: #{tpu_custom_call.1} parent=1 // pred_fallthru
      _
    // Predicated region
    $region22: #{tpu_custom_call.1} parent=1 // pred_check
      _
    $region23: #{tpu_custom_call.1} parent=1 // pred_check_branch
      %46 = sbr.rel (0) target = $region25
    $region24: #{tpu_custom_call.1} parent=1 // pred_region
      %s48 = ssub.s32 1024, 1024
      %49 = vsyncadd [#allocation6], %s48
      %s50 = sshll.u32 [#allocation7], 4
      %s51 = int_to_ptr.vmem [resolvable:$true] %s50
      %56 = dma.hbm_to_vmem [thread:$0]  %s5, 1024, %s51, [#allocation6], 64, 64, 4
    $region25: #{tpu_custom_call.1} parent=1 // pred_fallthru
      _
    // Predicated region
    $region26: #{tpu_custom_call.1} parent=1 // pred_check
      _
    $region27: #{tpu_custom_call.1} parent=1 // pred_check_branch
      %58 = sbr.rel (0) target = $region29
    $region28: #{tpu_custom_call.1} parent=1 // pred_region
      _
    $region29: #{tpu_custom_call.1} parent=1 // pred_fallthru
      _
    // Predicated region
    $region30: #{tpu_custom_call.1} parent=1 // pred_check
      _
    $region31: #{tpu_custom_call.1} parent=1 // pred_check_branch
      %60 = sbr.rel (0) target = $region33
    $region32: #{tpu_custom_call.1} parent=1 // pred_region
      %61 = dma.done [#allocation3], 1024
    $region33: #{tpu_custom_call.1} parent=1 // pred_fallthru
      _
    // Predicated region
    $region34: #{tpu_custom_call.1} parent=1 // pred_check
      _
    $region35: #{tpu_custom_call.1} parent=1 // pred_check_branch
      %63 = sbr.rel (0) target = $region37
    $region36: #{tpu_custom_call.1} parent=1 // pred_region
      %64 = dma.done [#allocation6], 256
    $region37: #{tpu_custom_call.1} parent=1 // pred_fallthru
      _
    // Predicated region
    $region38: #{tpu_custom_call.1} parent=1 // pred_check
      _
    $region39: #{tpu_custom_call.1} parent=1 // pred_check_branch
      %66 = sbr.rel (0) target = $region41
    $region40: #{tpu_custom_call.1} parent=1 // pred_region
      %67 = dma.done [#allocation6], 1024
    $region41: #{tpu_custom_call.1} parent=1 // pred_fallthru
      _
    %v69 = vld [vmem:[#allocation2] sm:$0xff]
    %v70 = vld [vmem:[#allocation2 + $0x8] sm:$0xff]
    %v71 = vld [vmem:[#allocation2 + $0x10] sm:$0xff]
    %v72 = vld [vmem:[#allocation2 + $0x18] sm:$0xff]
    %v73 = vld [vmem:[#allocation2 + $0x20] sm:$0xff]
    %v74 = vld [vmem:[#allocation2 + $0x28] sm:$0xff]
    %v75 = vld [vmem:[#allocation2 + $0x30] sm:$0xff]
    %v76 = vld [vmem:[#allocation2 + $0x38] sm:$0xff]
    %vm77 = vcmask 261120
    %v78 = vsel %vm77, %v69, 0.0
    %v79 = vrot.slane %v78, 4
    %v80 = vadd.f32 %v78, %v79
    %v81 = vrot.slane %v80, 2
    %v82 = vadd.f32 %v80, %v81
    %v83 = vrot.slane %v82, 1
    %v84 = vadd.f32 %v82, %v83
    %v85 = vsel %vm77, %v70, 0.0
    %v86 = vrot.slane %v85, 4
    %v87 = vadd.f32 %v85, %v86
    %v88 = vrot.slane %v87, 2
    %v89 = vadd.f32 %v87, %v88
    %v90 = vrot.slane %v89, 1
    %v91 = vadd.f32 %v89, %v90
    %v92 = vsel %vm77, %v71, 0.0
    %v93 = vrot.slane %v92, 4
    %v94 = vadd.f32 %v92, %v93
    %v95 = vrot.slane %v94, 2
    %v96 = vadd.f32 %v94, %v95
    %v97 = vrot.slane %v96, 1
    %v98 = vadd.f32 %v96, %v97
    %v99 = vsel %vm77, %v72, 0.0
    %v100 = vrot.slane %v99, 4
    %v101 = vadd.f32 %v99, %v100
    %v102 = vrot.slane %v101, 2
    %v103 = vadd.f32 %v101, %v102
    %v104 = vrot.slane %v103, 1
    %v105 = vadd.f32 %v103, %v104
    %v106 = vsel %vm77, %v73, 0.0
    %v107 = vrot.slane %v106, 4
    %v108 = vadd.f32 %v106, %v107
    %v109 = vrot.slane %v108, 2
    %v110 = vadd.f32 %v108, %v109
    %v111 = vrot.slane %v110, 1
    %v112 = vadd.f32 %v110, %v111
    %v113 = vsel %vm77, %v74, 0.0
    %v114 = vrot.slane %v113, 4
    %v115 = vadd.f32 %v113, %v114
    %v116 = vrot.slane %v115, 2
    %v117 = vadd.f32 %v115, %v116
    %v118 = vrot.slane %v117, 1
    %v119 = vadd.f32 %v117, %v118
    %v120 = vsel %vm77, %v75, 0.0
    %v121 = vrot.slane %v120, 4
    %v122 = vadd.f32 %v120, %v121
    %v123 = vrot.slane %v122, 2
    %v124 = vadd.f32 %v122, %v123
    %v125 = vrot.slane %v124, 1
    %v126 = vadd.f32 %v124, %v125
    %v127 = vsel %vm77, %v76, 0.0
    %v128 = vrot.slane %v127, 4
    %v129 = vadd.f32 %v127, %v128
    %v130 = vrot.slane %v129, 2
    %v131 = vadd.f32 %v129, %v130
    %v132 = vrot.slane %v131, 1
    %v133 = vadd.f32 %v131, %v132
    %v134 = vmul.f32 %v84, 0.125
    %v135 = vmul.f32 %v91, 0.125
    %v136 = vmul.f32 %v98, 0.125
    %v137 = vmul.f32 %v105, 0.125
    %v138 = vmul.f32 %v112, 0.125
    %v139 = vmul.f32 %v119, 0.125
    %v140 = vmul.f32 %v126, 0.125
    %v141 = vmul.f32 %v133, 0.125
    %v142 = vld [vmem:[%s1] sm:$0xff]
    %v143 = vlaneseq
    %v144 = vand.u32 %v143, 127
    %145 = vset.pattern.permute.xlu0 0
    %146 = vperm.xlu0 %145, %v142
    %v147 = vpop.permute.xlu0 %146
    %vm148 = vcmp.eq.s32.totalorder %v144, %v147
    %v149 = vsel %vm148, 1, 0
    %v150 = vcvt.s32.f32 %v149
    %v151 = vlaneseq
    %v152 = vshrl.u32 %v151, 7
    %v153 = vsub.s32 0, %v152
    %v154 = vrot.slane %v150, %v153
    %156 = vbcast.lane.b32.xlu0 %v154, 256
    %v157 = vpop.permute.xlu0 %156
    %v158 = vlaneseq
    %v159 = vshrl.u32 %v158, 7
    %v160 = vsub.s32 1, %v159
    %v161 = vrot.slane %v150, %v160
    %163 = vbcast.lane.b32.xlu0 %v161, 256
    %v164 = vpop.permute.xlu0 %163
    %v165 = vlaneseq
    %v166 = vshrl.u32 %v165, 7
    %v167 = vsub.s32 2, %v166
    %v168 = vrot.slane %v150, %v167
    %170 = vbcast.lane.b32.xlu0 %v168, 256
    %v171 = vpop.permute.xlu0 %170
    %v172 = vlaneseq
    %v173 = vshrl.u32 %v172, 7
    %v174 = vsub.s32 3, %v173
    %v175 = vrot.slane %v150, %v174
    %177 = vbcast.lane.b32.xlu0 %v175, 256
    %v178 = vpop.permute.xlu0 %177
    %v179 = vlaneseq
    %v180 = vshrl.u32 %v179, 7
    %v181 = vsub.s32 4, %v180
    %v182 = vrot.slane %v150, %v181
    %184 = vbcast.lane.b32.xlu0 %v182, 256
    %v185 = vpop.permute.xlu0 %184
    %v186 = vlaneseq
    %v187 = vshrl.u32 %v186, 7
    %v188 = vsub.s32 5, %v187
    %v189 = vrot.slane %v150, %v188
    %191 = vbcast.lane.b32.xlu0 %v189, 256
    %v192 = vpop.permute.xlu0 %191
    %v193 = vlaneseq
    %v194 = vshrl.u32 %v193, 7
    %v195 = vsub.s32 6, %v194
    %v196 = vrot.slane %v150, %v195
    %198 = vbcast.lane.b32.xlu0 %v196, 256
    %v199 = vpop.permute.xlu0 %198
    %v200 = vlaneseq
    %v201 = vshrl.u32 %v200, 7
    %v202 = vsub.s32 7, %v201
    %v203 = vrot.slane %v150, %v202
    %205 = vbcast.lane.b32.xlu0 %v203, 256
    %v206 = vpop.permute.xlu0 %205
    %v207 = vmul.f32 %v69, %v157
    %v208 = vmul.f32 %v70, %v164
    %v209 = vmul.f32 %v71, %v171
    %v210 = vmul.f32 %v72, %v178
    %v211 = vmul.f32 %v73, %v185
    %v212 = vmul.f32 %v74, %v192
    %v213 = vmul.f32 %v75, %v199
    %v214 = vmul.f32 %v76, %v206
    %v215 = vsel %vm77, %v207, 0.0
    %v216 = vrot.slane %v215, 4
    %v217 = vadd.f32 %v215, %v216
    %v218 = vrot.slane %v217, 2
    %v219 = vadd.f32 %v217, %v218
    %v220 = vrot.slane %v219, 1
    %v221 = vadd.f32 %v219, %v220
    %v222 = vsel %vm77, %v208, 0.0
    %v223 = vrot.slane %v222, 4
    %v224 = vadd.f32 %v222, %v223
    %v225 = vrot.slane %v224, 2
    %v226 = vadd.f32 %v224, %v225
    %v227 = vrot.slane %v226, 1
    %v228 = vadd.f32 %v226, %v227
    %v229 = vsel %vm77, %v209, 0.0
    %v230 = vrot.slane %v229, 4
    %v231 = vadd.f32 %v229, %v230
    %v232 = vrot.slane %v231, 2
    %v233 = vadd.f32 %v231, %v232
    %v234 = vrot.slane %v233, 1
    %v235 = vadd.f32 %v233, %v234
    %v236 = vsel %vm77, %v210, 0.0
    %v237 = vrot.slane %v236, 4
    %v238 = vadd.f32 %v236, %v237
    %v239 = vrot.slane %v238, 2
    %v240 = vadd.f32 %v238, %v239
    %v241 = vrot.slane %v240, 1
    %v242 = vadd.f32 %v240, %v241
    %v243 = vsel %vm77, %v211, 0.0
    %v244 = vrot.slane %v243, 4
    %v245 = vadd.f32 %v243, %v244
    %v246 = vrot.slane %v245, 2
    %v247 = vadd.f32 %v245, %v246
    %v248 = vrot.slane %v247, 1
    %v249 = vadd.f32 %v247, %v248
    %v250 = vsel %vm77, %v212, 0.0
    %v251 = vrot.slane %v250, 4
    %v252 = vadd.f32 %v250, %v251
    %v253 = vrot.slane %v252, 2
    %v254 = vadd.f32 %v252, %v253
    %v255 = vrot.slane %v254, 1
    %v256 = vadd.f32 %v254, %v255
    %v257 = vsel %vm77, %v213, 0.0
    %v258 = vrot.slane %v257, 4
    %v259 = vadd.f32 %v257, %v258
    %v260 = vrot.slane %v259, 2
    %v261 = vadd.f32 %v259, %v260
    %v262 = vrot.slane %v261, 1
    %v263 = vadd.f32 %v261, %v262
    %v264 = vsel %vm77, %v214, 0.0
    %v265 = vrot.slane %v264, 4
    %v266 = vadd.f32 %v264, %v265
    %v267 = vrot.slane %v266, 2
    %v268 = vadd.f32 %v266, %v267
    %v269 = vrot.slane %v268, 1
    %v270 = vadd.f32 %v268, %v269
    %v271 = vld [vmem:[%s2] sm:$0xf]
    %v272 = vld [vmem:[%s2 + $0x4] sm:$0xf]
    %v273 = vld [vmem:[%s2 + $0x8] sm:$0xf]
    %v274 = vld [vmem:[%s2 + $0xc] sm:$0xf]
    %v275 = vld [vmem:[#allocation5] sm:$0xf]
    %v276 = vld [vmem:[#allocation5 + $0x4] sm:$0xf]
    %v277 = vld [vmem:[#allocation5 + $0x8] sm:$0xf]
    %v278 = vld [vmem:[#allocation5 + $0xc] sm:$0xf]
    %v279 = vld [vmem:[%s4] sm:$0x1]
    %v280 = vld [vmem:[#allocation7] sm:$0xf]
    %v281 = vld [vmem:[#allocation7 + $0x4] sm:$0xf]
    %v282 = vld [vmem:[#allocation7 + $0x8] sm:$0xf]
    %v283 = vld [vmem:[#allocation7 + $0xc] sm:$0xf]
    %v284 = vld [vmem:[#allocation7 + $0x10] sm:$0xf]
    %v285 = vld [vmem:[#allocation7 + $0x14] sm:$0xf]
    %v286 = vld [vmem:[#allocation7 + $0x18] sm:$0xf]
    %v287 = vld [vmem:[#allocation7 + $0x1c] sm:$0xf]
    %v288 = vld [vmem:[#allocation7 + $0x20] sm:$0xf]
    %v289 = vld [vmem:[#allocation7 + $0x24] sm:$0xf]
    %v290 = vld [vmem:[#allocation7 + $0x28] sm:$0xf]
    %v291 = vld [vmem:[#allocation7 + $0x2c] sm:$0xf]
    %v292 = vld [vmem:[#allocation7 + $0x30] sm:$0xf]
    %v293 = vld [vmem:[#allocation7 + $0x34] sm:$0xf]
    %v294 = vld [vmem:[#allocation7 + $0x38] sm:$0xf]
    %v295 = vld [vmem:[#allocation7 + $0x3c] sm:$0xf]
    %v296 = vld [vmem:[%s6] sm:$0x1]
    %v297 = vpack.c.bf16 %v221, %v221
    %v298 = vpack.c.bf16 %v228, %v228
    %v299 = vpack.c.bf16 %v235, %v235
    %v300 = vpack.c.bf16 %v242, %v242
    %v301 = vpack.c.bf16 %v249, %v249
    %v302 = vpack.c.bf16 %v256, %v256
    %v303 = vpack.c.bf16 %v263, %v263
    %v304 = vpack.c.bf16 %v270, %v270
    %v313 = vunpack.c.l.b16 %v297
    %v314 = vunpack.c.l.b16 %v298
    %v315 = vunpack.c.l.b16 %v299
    %v316 = vunpack.c.l.b16 %v300
    %v317 = vunpack.c.l.b16 %v301
    %v318 = vunpack.c.l.b16 %v302
    %v319 = vunpack.c.l.b16 %v303
    %v320 = vunpack.c.l.b16 %v304
    %vm321 = vcmask 1041409
    %v322 = vsel %vm321, %v314, %v313
    %vm323 = vcmask 1042434
    %v324 = vsel %vm323, %v315, %v322
    %vm325 = vcmask 1043459
    %v326 = vsel %vm325, %v316, %v324
    %vm327 = vcmask 1044484
    %v328 = vsel %vm327, %v317, %v326
    %vm329 = vcmask 1045509
    %v330 = vsel %vm329, %v318, %v328
    %vm331 = vcmask 1046534
    %v332 = vsel %vm331, %v319, %v330
    %vm333 = vcmask 1047559
    %v334 = vsel %vm333, %v320, %v332
    %v335 = vpack.c.b16 %v334, %v334
    %v340 = vunpack.c.l.b16 %v271
    %v341 = vunpack.c.l.b16 %v272
    %v342 = vunpack.c.l.b16 %v273
    %v343 = vunpack.c.l.b16 %v274
    %v344 = vpack.c.b16 %v341, %v340
    %v345 = vpack.c.b16 %v343, %v342
    %v349 = vsel %vm77, %v335, 0
    %351 = vmatprep.subr.bf16.mxu0 0
    %352 = vmatpush1.bf16.msra.mxu0 %v344
    %353 = vmatprep.subr.bf16.mxu0 0
    %354 = vmatpush1.bf16.msra.mxu0 %v345
    %355 = vmatprep.subr.bf16.mxu0 0
    %356 = vmatpush1.bf16.msra.mxu0 0
    %357 = vmatprep.subr.bf16.mxu0 0
    %358 = vmatpush1.bf16.msra.mxu0 0
    %359 = vmatprep.subr.bf16.mxu0 0
    %360 = vmatpush1.bf16.msra.mxu0 0
    %361 = vmatprep.subr.bf16.mxu0 0
    %362 = vmatpush1.bf16.msra.mxu0 0
    %363 = vmatprep.subr.bf16.mxu0 0
    %364 = vmatpush1.bf16.msra.mxu0 0
    %365 = vmatprep.subr.bf16.mxu0 0
    %366 = vmatpush1.bf16.msra.mxu0 0
    %367 = vmatprep.subr.bf16.mxu0 0
    %368 = vmatpush1.bf16.msra.mxu0 0
    %369 = vmatprep.subr.bf16.mxu0 0
    %370 = vmatpush1.bf16.msra.mxu0 0
    %371 = vmatprep.subr.bf16.mxu0 0
    %372 = vmatpush1.bf16.msra.mxu0 0
    %373 = vmatprep.subr.bf16.mxu0 0
    %374 = vmatpush1.bf16.msra.mxu0 0
    %375 = vmatprep.subr.bf16.mxu0 0
    %376 = vmatpush1.bf16.msra.mxu0 0
    %377 = vmatprep.subr.bf16.mxu0 0
    %378 = vmatpush1.bf16.msra.mxu0 0
    %379 = vmatprep.subr.bf16.mxu0 0
    %380 = vmatpush1.bf16.msra.mxu0 0
    %381 = vmatprep.subr.bf16.mxu0 0
    %382 = vmatpush1.bf16.msra.mxu0 0
    %383 = vmatprep.mubr.bf16.mxu0 0
    %384 = vmatmul.mubr.bf16.gmra.mrb[0].mxu0 %v349
    %v385 = vpop.f32.mrb[0].mxu0
    %v386 = vadd.f32 0.0, %v385
    %v387 = vpop.f32.mrb[0].mxu0
    %v388 = vpop.f32.mrb[0].mxu0
    %v389 = vpop.f32.mrb[0].mxu0
    %390 = vdwg.mxu0
    %v392 = vlaneseq
    %v393 = vshrl.u32 %v392, 7
    %v394 = vsub.s32 0, %v393
    %v395 = vrot.slane %v279, %v394
    %v397 = vadd.f32 %v395, %v386
    %v398 = vpack.c.bf16 %v134, %v134
    %v399 = vpack.c.bf16 %v135, %v135
    %v400 = vpack.c.bf16 %v136, %v136
    %v401 = vpack.c.bf16 %v137, %v137
    %v402 = vpack.c.bf16 %v138, %v138
    %v403 = vpack.c.bf16 %v139, %v139
    %v404 = vpack.c.bf16 %v140, %v140
    %v405 = vpack.c.bf16 %v141, %v141
    %v414 = vunpack.c.l.b16 %v398
    %v415 = vunpack.c.l.b16 %v399
    %v416 = vunpack.c.l.b16 %v400
    %v417 = vunpack.c.l.b16 %v401
    %v418 = vunpack.c.l.b16 %v402
    %v419 = vunpack.c.l.b16 %v403
    %v420 = vunpack.c.l.b16 %v404
    %v421 = vunpack.c.l.b16 %v405
    %v422 = vsel %vm321, %v415, %v414
    %v423 = vsel %vm323, %v416, %v422
    %v424 = vsel %vm325, %v417, %v423
    %v425 = vsel %vm327, %v418, %v424
    %v426 = vsel %vm329, %v419, %v425
    %v427 = vsel %vm331, %v420, %v426
    %v428 = vsel %vm333, %v421, %v427
    %v429 = vpack.c.b16 %v428, %v428
    %v434 = vunpack.c.l.b16 %v275
    %v435 = vunpack.c.l.b16 %v276
    %v436 = vunpack.c.l.b16 %v277
    %v437 = vunpack.c.l.b16 %v278
    %v438 = vpack.c.b16 %v435, %v434
    %v439 = vpack.c.b16 %v437, %v436
    %v443 = vsel %vm77, %v429, 0
    %445 = vmatprep.subr.bf16.mxu0 0
    %446 = vmatpush1.bf16.msra.mxu0 %v438
    %447 = vmatprep.subr.bf16.mxu0 0
    %448 = vmatpush1.bf16.msra.mxu0 %v439
    %449 = vmatprep.subr.bf16.mxu0 0
    %450 = vmatpush1.bf16.msra.mxu0 0
    %451 = vmatprep.subr.bf16.mxu0 0
    %452 = vmatpush1.bf16.msra.mxu0 0
    %453 = vmatprep.subr.bf16.mxu0 0
    %454 = vmatpush1.bf16.msra.mxu0 0
    %455 = vmatprep.subr.bf16.mxu0 0
    %456 = vmatpush1.bf16.msra.mxu0 0
    %457 = vmatprep.subr.bf16.mxu0 0
    %458 = vmatpush1.bf16.msra.mxu0 0
    %459 = vmatprep.subr.bf16.mxu0 0
    %460 = vmatpush1.bf16.msra.mxu0 0
    %461 = vmatprep.subr.bf16.mxu0 0
    %462 = vmatpush1.bf16.msra.mxu0 0
    %463 = vmatprep.subr.bf16.mxu0 0
    %464 = vmatpush1.bf16.msra.mxu0 0
    %465 = vmatprep.subr.bf16.mxu0 0
    %466 = vmatpush1.bf16.msra.mxu0 0
    %467 = vmatprep.subr.bf16.mxu0 0
    %468 = vmatpush1.bf16.msra.mxu0 0
    %469 = vmatprep.subr.bf16.mxu0 0
    %470 = vmatpush1.bf16.msra.mxu0 0
    %471 = vmatprep.subr.bf16.mxu0 0
    %472 = vmatpush1.bf16.msra.mxu0 0
    %473 = vmatprep.subr.bf16.mxu0 0
    %474 = vmatpush1.bf16.msra.mxu0 0
    %475 = vmatprep.subr.bf16.mxu0 0
    %476 = vmatpush1.bf16.msra.mxu0 0
    %477 = vmatprep.mubr.bf16.mxu0 0
    %478 = vmatmul.mubr.bf16.gmra.mrb[0].mxu0 %v443
    %v479 = vpop.f32.mrb[0].mxu0
    %v480 = vadd.f32 0.0, %v479
    %v481 = vpop.f32.mrb[0].mxu0
    %v482 = vpop.f32.mrb[0].mxu0
    %v483 = vpop.f32.mrb[0].mxu0
    %484 = vdwg.mxu0
    %v485 = vadd.f32 %v397, %v480
    %v486 = vmax.f32 %v485, 0.0
    %v487 = vpack.c.bf16 %v486, %v486
    %v489 = vlaneseq
    %v490 = vshrl.u32 %v489, 7
    %v491 = vsub.s32 0, %v490
    %v492 = vrot.slane %v296, %v491
    %v510 = vunpack.c.l.b16 %v280
    %v511 = vunpack.c.l.b16 %v281
    %v512 = vunpack.c.l.b16 %v282
    %v513 = vunpack.c.l.b16 %v283
    %v514 = vunpack.c.l.b16 %v284
    %v515 = vunpack.c.l.b16 %v285
    %v516 = vunpack.c.l.b16 %v286
    %v517 = vunpack.c.l.b16 %v287
    %v518 = vunpack.c.l.b16 %v288
    %v519 = vunpack.c.l.b16 %v289
    %v520 = vunpack.c.l.b16 %v290
    %v521 = vunpack.c.l.b16 %v291
    %v522 = vunpack.c.l.b16 %v292
    %v523 = vunpack.c.l.b16 %v293
    %v524 = vunpack.c.l.b16 %v294
    %v525 = vunpack.c.l.b16 %v295
    %v526 = vpack.c.b16 %v511, %v510
    %v527 = vpack.c.b16 %v513, %v512
    %v528 = vpack.c.b16 %v515, %v514
    %v529 = vpack.c.b16 %v517, %v516
    %v530 = vpack.c.b16 %v519, %v518
    %v531 = vpack.c.b16 %v521, %v520
    %v532 = vpack.c.b16 %v523, %v522
    %v533 = vpack.c.b16 %v525, %v524
    %542 = vmatprep.subr.bf16.mxu0 0
    %543 = vmatpush1.bf16.msra.mxu0 %v526
    %544 = vmatprep.subr.bf16.mxu0 0
    %545 = vmatpush1.bf16.msra.mxu0 %v527
    %546 = vmatprep.subr.bf16.mxu0 0
    %547 = vmatpush1.bf16.msra.mxu0 %v528
    %548 = vmatprep.subr.bf16.mxu0 0
    %549 = vmatpush1.bf16.msra.mxu0 %v529
    %550 = vmatprep.subr.bf16.mxu0 0
    %551 = vmatpush1.bf16.msra.mxu0 %v530
    %552 = vmatprep.subr.bf16.mxu0 0
    %553 = vmatpush1.bf16.msra.mxu0 %v531
    %554 = vmatprep.subr.bf16.mxu0 0
    %555 = vmatpush1.bf16.msra.mxu0 %v532
    %556 = vmatprep.subr.bf16.mxu0 0
    %557 = vmatpush1.bf16.msra.mxu0 %v533
    %558 = vmatprep.subr.bf16.mxu0 0
    %559 = vmatpush1.bf16.msra.mxu0 0
    %560 = vmatprep.subr.bf16.mxu0 0
    %561 = vmatpush1.bf16.msra.mxu0 0
    %562 = vmatprep.subr.bf16.mxu0 0
    %563 = vmatpush1.bf16.msra.mxu0 0
    %564 = vmatprep.subr.bf16.mxu0 0
    %565 = vmatpush1.bf16.msra.mxu0 0
    %566 = vmatprep.subr.bf16.mxu0 0
    %567 = vmatpush1.bf16.msra.mxu0 0
    %568 = vmatprep.subr.bf16.mxu0 0
    %569 = vmatpush1.bf16.msra.mxu0 0
    %570 = vmatprep.subr.bf16.mxu0 0
    %571 = vmatpush1.bf16.msra.mxu0 0
    %572 = vmatprep.subr.bf16.mxu0 0
    %573 = vmatpush1.bf16.msra.mxu0 0
    %574 = vmatprep.mubr.bf16.mxu0 0
    %575 = vmatmul.mubr.bf16.gmra.mrb[0].mxu0 %v487
    %v576 = vpop.f32.mrb[0].mxu0
    %v577 = vadd.f32 %v492, %v576
    %v578 = vpop.f32.mrb[0].mxu0
    %v579 = vpop.f32.mrb[0].mxu0
    %v580 = vpop.f32.mrb[0].mxu0
    %581 = vdwg.mxu0
    %v582 = vmax.f32 %v577, 0.0
    %583 = vst [vmem:[#allocation8] sm:$0xff] %v582
    // Predicated region
    $region42: #{tpu_custom_call.1} parent=1 // pred_check
      _
    $region43: #{tpu_custom_call.1} parent=1 // pred_check_branch
      %585 = sbr.rel (0) target = $region45
    $region44: #{tpu_custom_call.1} parent=1 // pred_region
      %s587 = ssub.s32 128, 128
      %588 = vsyncadd [#allocation4], %s587
      %s590 = sshll.u32 [#allocation8], 4
      %s591 = int_to_ptr.vmem [resolvable:$true] %s590
      %593 = dma.vmem_to_hbm [thread:$0]  %s591, 128, %s7, [#allocation4]
    $region45: #{tpu_custom_call.1} parent=1 // pred_fallthru
      _
    // Predicated region
    $region46: #{tpu_custom_call.1} parent=1 // pred_check
      _
    $region47: #{tpu_custom_call.1} parent=1 // pred_check_branch
      %595 = sbr.rel (0) target = $region49
    $region48: #{tpu_custom_call.1} parent=1 // pred_region
      %596 = dma.done [#allocation4], 128
    $region49: #{tpu_custom_call.1} parent=1 // pred_fallthru
      _
    %597 = vsyncpa [#allocation3], 1
    %598 = vsyncpa [#allocation6], 1
    %599 = vsyncpa [#allocation4], 1

</llo_original>
